<compile_context>
chip_gen: v6e
topology: v6e:2x2x1
jax: 0.10.0
libtpu: 0.0.40
codegen_flags: <defaults>
</compile_context>

<pallas_src>
import functools

import jax
import jax.numpy as jnp
from jax.experimental import pallas as pl
from jax.experimental.pallas import tpu as pltpu


_MAX_BLOCK_B = 8192        # rows per batch tile (HBM saturates well before this)
_MAX_TILE_D = 2048         # lanes per feature tile when D is split
_N_INPUT_BUFFERS = 2       # BlockSpec double-buffering
_N_F32_TEMPS = 4           # live block-sized f32 temps (upcast, diffs, squares)
_VMEM_HEADROOM = 4 * 1024 * 1024


def _round_up(x, m):
    return ((x + m - 1) // m) * m


def _vmem_limit_bytes():
    """Generation-aware scoped-VMEM limit (~70% of physical capacity)."""
    try:
        cap = pltpu.get_tpu_info().vmem_capacity_bytes
    except Exception:
        cap = 64 * 1024 * 1024  # v7x per-TC capacity: most conservative fallback
    return max(16 * 1024 * 1024, min(int(cap * 0.7), 96 * 1024 * 1024))


def _pick_tiles(batch, dim, itemsize, vmem_limit):
    """Pick (block_b, tile_d) so inputs + double-buffers + temps fit VMEM."""
    # Feature tile: keep the full row when small; otherwise the largest
    # multiple of 128 that divides D exactly (exact reduction, no lane mask).
    if dim <= _MAX_TILE_D or dim % 128 != 0:
        tile_d = dim
    else:
        tile_d = 128
        for cand in range(_MAX_TILE_D, 127, -128):
            if dim % cand == 0:
                tile_d = cand
                break

    budget = vmem_limit - _VMEM_HEADROOM
    # 3 inputs x 2 buffers (input dtype) + block-sized f32 temporaries.
    per_row_bytes = (3 * _N_INPUT_BUFFERS * itemsize + _N_F32_TEMPS * 4) * tile_d
    block_b = budget // per_row_bytes
    block_b = min(block_b, _MAX_BLOCK_B, _round_up(batch, 8))
    block_b = max(8, (block_b // 8) * 8)  # multiple of 8 sublanes
    return int(block_b), int(tile_d)


def _triplet_kernel(a_ref, p_ref, n_ref, out_ref, dpos_acc, dneg_acc,
                    *, margin, batch, block_b):
    i = pl.program_id(0)          # batch tile
    k = pl.program_id(1)          # feature (reduction) tile

    @pl.when(k == 0)
    def _():
        dpos_acc[...] = jnp.zeros_like(dpos_acc)
        dneg_acc[...] = jnp.zeros_like(dneg_acc)

    a = a_ref[...].astype(jnp.float32)
    dp = a - p_ref[...].astype(jnp.float32)
    dn = a - n_ref[...].astype(jnp.float32)
    # partial sum-of-squares over this feature tile -> (block_b, 1)
    dpos_acc[...] += jnp.sum(dp * dp, axis=1, keepdims=True)
    dneg_acc[...] += jnp.sum(dn * dn, axis=1, keepdims=True)

    @pl.when(k == pl.num_programs(1) - 1)
    def _():
        dist_pos = jnp.sqrt(dpos_acc[...])
        dist_neg = jnp.sqrt(dneg_acc[...])
        # hinge: relu(d_pos - d_neg + margin)
        losses = jnp.maximum(dist_pos - dist_neg + margin, 0.0)  # (block_b, 1)

        # Mask rows past the true batch size (edge tile). Keep this AFTER the
        # hinge: any garbage/NaN from padded rows is replaced by 0 here.
        row = i * block_b + jax.lax.broadcasted_iota(jnp.int32, (block_b, 1), 0)
        losses = jnp.where(row < batch, losses, 0.0)

        # per-tile partial sum, broadcast into this tile's lane-dense block
        # (no cross-tile accumulator -> batch axis can run "parallel").
        partial = jnp.sum(losses)
        out_ref[...] = jnp.full((1, 8, 128), partial, dtype=jnp.float32)


def triplet_loss(anchor, positive, negative, margin=1.0, *,
                 block_b=None, tile_d=None):
    assert anchor.shape == positive.shape == negative.shape
    assert anchor.dtype == positive.dtype == negative.dtype
    B, D = anchor.shape

    vmem_limit = _vmem_limit_bytes()
    auto_b, auto_d = _pick_tiles(B, D, jnp.dtype(anchor.dtype).itemsize,
                                 vmem_limit)
    if block_b is None:
        block_b = auto_b
    if tile_d is None:
        tile_d = auto_d
    assert tile_d == D or D % tile_d == 0, (tile_d, D)

    num_b = pl.cdiv(B, block_b)
    num_d = pl.cdiv(D, tile_d)

    kernel = functools.partial(
        _triplet_kernel, margin=float(margin), batch=B, block_b=block_b)

    in_spec = pl.BlockSpec((block_b, tile_d), lambda i, k: (i, k))
    out_spec = pl.BlockSpec((1, 8, 128), lambda i, k: (i, 0, 0))

    partials = pl.pallas_call(
        kernel,
        out_shape=jax.ShapeDtypeStruct((num_b, 8, 128), jnp.float32),
        grid_spec=pltpu.PrefetchScalarGridSpec(
            num_scalar_prefetch=0,
            grid=(num_b, num_d),
            in_specs=[in_spec, in_spec, in_spec],
            out_specs=out_spec,
            scratch_shapes=[
                pltpu.VMEM((block_b, 1), jnp.float32),   # sum((a-p)^2)
                pltpu.VMEM((block_b, 1), jnp.float32),   # sum((a-n)^2)
            ],
        ),
        compiler_params=pltpu.CompilerParams(
            dimension_semantics=("parallel", "arbitrary"),
            vmem_limit_bytes=vmem_limit,
        ),
    )(anchor, positive, negative)

    # Final reduction over a handful of partial sums stays in plain JAX.
    return jnp.sum(partials[:, 0, 0]) / jnp.float32(B)


def _reference(anchor, positive, negative, margin=1.0):
    dp = jnp.linalg.norm(anchor - positive, axis=1)
    dn = jnp.linalg.norm(anchor - negative, axis=1)
    return jnp.mean(jnp.maximum(dp - dn + margin, 0.0))


if __name__ == "__main__":
    key = jax.random.PRNGKey(0)
    k1, k2, k3 = jax.random.split(key, 3)

    # Small embedding batch; B=10 is intentionally NOT a multiple of 8 to
    # exercise the cdiv-grid + row-mask path.
    B, D = 10, 128
    anchor = jax.random.normal(k1, (B, D), dtype=jnp.float32)
    positive = jax.random.normal(k2, (B, D), dtype=jnp.float32)
    negative = jax.random.normal(k3, (B, D), dtype=jnp.float32)

    loss = jax.block_until_ready(triplet_loss(anchor, positive, negative,
                                              margin=1.0))
    ref = _reference(anchor, positive, negative, margin=1.0)
    assert jnp.allclose(loss, ref, atol=1e-5, rtol=1e-5), (loss, ref)

    # Exercise the feature-tiled (2-D grid) reduction path plus an edge batch
    # tile, with forced small tiles.
    B2, D2 = 20, 256
    a2 = jax.random.normal(k1, (B2, D2), dtype=jnp.float32)
    p2 = jax.random.normal(k2, (B2, D2), dtype=jnp.float32)
    n2 = jax.random.normal(k3, (B2, D2), dtype=jnp.float32)
    loss2 = jax.block_until_ready(
        triplet_loss(a2, p2, n2, margin=1.0, block_b=8, tile_d=128))
    ref2 = _reference(a2, p2, n2, margin=1.0)
    assert jnp.allclose(loss2, ref2, atol=1e-5, rtol=1e-5), (loss2, ref2)

    print("KERNEL_OK")
</pallas_src>

<mosaic_0001>
module attributes {stable_mosaic.version = 11 : i64} {
  func.func @_triplet_kernel(%arg0: i32, %arg1: i32, %arg2: memref<16x128xf32, #tpu.memory_space<vmem>>, %arg3: memref<16x128xf32, #tpu.memory_space<vmem>>, %arg4: memref<16x128xf32, #tpu.memory_space<vmem>>, %arg5: memref<1x8x128xf32, #tpu.memory_space<vmem>>, %arg6: memref<16x1xf32, #tpu.memory_space<vmem>>, %arg7: memref<16x1xf32, #tpu.memory_space<vmem>>) attributes {dimension_semantics = [#tpu.dimension_semantics<parallel>, #tpu.dimension_semantics<arbitrary>], iteration_bounds = array<i64: 1, 1>, scalar_prefetch = 0 : i64, scratch_operands = 2 : i64, tpu.core_type = #tpu.core_type<tc>, window_params = [{transform_indices = @transform_0, window_bounds = array<i64: 16, 128>}, {transform_indices = @transform_1, window_bounds = array<i64: 16, 128>}, {transform_indices = @transform_2, window_bounds = array<i64: 16, 128>}, {transform_indices = @transform_3, window_bounds = array<i64: 1, 8, 128>}]} {
    %c0_i32 = arith.constant 0 : i32
    %0 = arith.cmpi eq, %arg1, %c0_i32 : i32
    %1 = arith.extui %0 : i1 to i32
    %c0_i32_0 = arith.constant 0 : i32
    %2 = arith.cmpi ne, %1, %c0_i32_0 : i32
    scf.if %2 {
      %cst_17 = arith.constant 0.000000e+00 : f32
      %23 = vector.broadcast %cst_17 : f32 to vector<16x1xf32>
      %c0_18 = arith.constant 0 : index
      %c0_19 = arith.constant 0 : index
      %24 = vector.load %arg6[%c0_18, %c0_19] : memref<16x1xf32, #tpu.memory_space<vmem>>, vector<16x1xf32>
      tpu.vector_store %arg6[%c0_18, %c0_19], %23 {strides = array<i32>} : memref<16x1xf32, #tpu.memory_space<vmem>>, vector<16x1xf32>,
      %cst_20 = arith.constant 0.000000e+00 : f32
      %25 = vector.broadcast %cst_20 : f32 to vector<16x1xf32>
      %c0_21 = arith.constant 0 : index
      %c0_22 = arith.constant 0 : index
      %26 = vector.load %arg7[%c0_21, %c0_22] : memref<16x1xf32, #tpu.memory_space<vmem>>, vector<16x1xf32>
      tpu.vector_store %arg7[%c0_21, %c0_22], %25 {strides = array<i32>} : memref<16x1xf32, #tpu.memory_space<vmem>>, vector<16x1xf32>,
    } else {
    }
    %c0 = arith.constant 0 : index
    %c0_1 = arith.constant 0 : index
    %3 = vector.load %arg2[%c0, %c0_1] : memref<16x128xf32, #tpu.memory_space<vmem>>, vector<16x128xf32>
    %c0_2 = arith.constant 0 : index
    %c0_3 = arith.constant 0 : index
    %4 = vector.load %arg3[%c0_2, %c0_3] : memref<16x128xf32, #tpu.memory_space<vmem>>, vector<16x128xf32>
    %5 = arith.subf %3, %4 : vector<16x128xf32>
    %c0_4 = arith.constant 0 : index
    %c0_5 = arith.constant 0 : index
    %6 = vector.load %arg4[%c0_4, %c0_5] : memref<16x128xf32, #tpu.memory_space<vmem>>, vector<16x128xf32>
    %7 = arith.subf %3, %6 : vector<16x128xf32>
    %c0_6 = arith.constant 0 : index
    %c0_7 = arith.constant 0 : index
    %8 = vector.load %arg6[%c0_6, %c0_7] : memref<16x1xf32, #tpu.memory_space<vmem>>, vector<16x1xf32>
    %9 = arith.mulf %5, %5 : vector<16x128xf32>
    %cst = arith.constant dense<0.000000e+00> : vector<16xf32>
    %10 = vector.multi_reduction <add>, %9, %cst [1] : vector<16x128xf32> to vector<16xf32>
    %11 = vector.shape_cast %10 : vector<16xf32> to vector<16x1xf32>
    %12 = arith.addf %8, %11 : vector<16x1xf32>
    %c0_8 = arith.constant 0 : index
    %c0_9 = arith.constant 0 : index
    %13 = vector.load %arg6[%c0_8, %c0_9] : memref<16x1xf32, #tpu.memory_space<vmem>>, vector<16x1xf32>
    tpu.vector_store %arg6[%c0_8, %c0_9], %12 {strides = array<i32>} : memref<16x1xf32, #tpu.memory_space<vmem>>, vector<16x1xf32>,
    %c0_10 = arith.constant 0 : index
    %c0_11 = arith.constant 0 : index
    %14 = vector.load %arg7[%c0_10, %c0_11] : memref<16x1xf32, #tpu.memory_space<vmem>>, vector<16x1xf32>
    %15 = arith.mulf %7, %7 : vector<16x128xf32>
    %cst_12 = arith.constant dense<0.000000e+00> : vector<16xf32>
    %16 = vector.multi_reduction <add>, %15, %cst_12 [1] : vector<16x128xf32> to vector<16xf32>
    %17 = vector.shape_cast %16 : vector<16xf32> to vector<16x1xf32>
    %18 = arith.addf %14, %17 : vector<16x1xf32>
    %c0_13 = arith.constant 0 : index
    %c0_14 = arith.constant 0 : index
    %19 = vector.load %arg7[%c0_13, %c0_14] : memref<16x1xf32, #tpu.memory_space<vmem>>, vector<16x1xf32>
    tpu.vector_store %arg7[%c0_13, %c0_14], %18 {strides = array<i32>} : memref<16x1xf32, #tpu.memory_space<vmem>>, vector<16x1xf32>,
    %c0_i32_15 = arith.constant 0 : i32
    %20 = arith.cmpi eq, %arg1, %c0_i32_15 : i32
    %21 = arith.extui %20 : i1 to i32
    %c0_i32_16 = arith.constant 0 : i32
    %22 = arith.cmpi ne, %21, %c0_i32_16 : i32
    scf.if %22 {
      %c0_17 = arith.constant 0 : index
      %c0_18 = arith.constant 0 : index
      %23 = vector.load %arg6[%c0_17, %c0_18] : memref<16x1xf32, #tpu.memory_space<vmem>>, vector<16x1xf32>
      %24 = math.sqrt %23 : vector<16x1xf32>
      %c0_19 = arith.constant 0 : index
      %c0_20 = arith.constant 0 : index
      %25 = vector.load %arg7[%c0_19, %c0_20] : memref<16x1xf32, #tpu.memory_space<vmem>>, vector<16x1xf32>
      %26 = math.sqrt %25 : vector<16x1xf32>
      %27 = arith.subf %24, %26 : vector<16x1xf32>
      %cst_21 = arith.constant 1.000000e+00 : f32
      %28 = vector.broadcast %cst_21 : f32 to vector<16x1xf32>
      %29 = arith.addf %27, %28 : vector<16x1xf32>
      %cst_22 = arith.constant 0.000000e+00 : f32
      %30 = vector.broadcast %cst_22 : f32 to vector<16x1xf32>
      %31 = arith.maximumf %29, %30 : vector<16x1xf32>
      %c16_i32 = arith.constant 16 : i32
      %32 = arith.muli %arg0, %c16_i32 : i32
      %33 = tpu.iota {dimensions = array<i32: 0>} : vector<16x1xi32>
      %34 = vector.broadcast %32 : i32 to vector<16x1xi32>
      %35 = arith.addi %34, %33 : vector<16x1xi32>
      %c10_i32 = arith.constant 10 : i32
      %36 = vector.broadcast %c10_i32 : i32 to vector<16x1xi32>
      %37 = arith.cmpi slt, %35, %36 : vector<16x1xi32>
      %cst_23 = arith.constant 0.000000e+00 : f32
      %38 = vector.broadcast %cst_23 : f32 to vector<16x1xf32>
      %39 = arith.select %37, %31, %38 : vector<16x1xi1>, vector<16x1xf32>
      %40 = vector.shape_cast %39 : vector<16x1xf32> to vector<1x16x1xf32>
      %cst_24 = arith.constant dense<0.000000e+00> : vector<1xf32>
      %41 = vector.multi_reduction <add>, %40, %cst_24 [1, 2] : vector<1x16x1xf32> to vector<1xf32>
      %42 = vector.shape_cast %41 : vector<1xf32> to vector<1x1x1xf32>
      %43 = vector.extract %42[0, 0, 0] : f32 from vector<1x1x1xf32>
      %44 = vector.broadcast %43 : f32 to vector<1x8x128xf32>
      %c0_25 = arith.constant 0 : index
      %c0_26 = arith.constant 0 : index
      %c0_27 = arith.constant 0 : index
      %45 = vector.load %arg5[%c0_25, %c0_26, %c0_27] : memref<1x8x128xf32, #tpu.memory_space<vmem>>, vector<1x8x128xf32>
      tpu.vector_store %arg5[%c0_25, %c0_26, %c0_27], %44 {strides = array<i32>} : memref<1x8x128xf32, #tpu.memory_space<vmem>>, vector<1x8x128xf32>,
    } else {
    }
    return
  }
  func.func @transform_0(%arg0: i32, %arg1: i32) -> (i32, i32) {
    %c0_i32 = arith.constant 0 : i32
    return %arg0, %arg1 : i32, i32
  }
  func.func @transform_1(%arg0: i32, %arg1: i32) -> (i32, i32) {
    %c0_i32 = arith.constant 0 : i32
    return %arg0, %arg1 : i32, i32
  }
  func.func @transform_2(%arg0: i32, %arg1: i32) -> (i32, i32) {
    %c0_i32 = arith.constant 0 : i32
    return %arg0, %arg1 : i32, i32
  }
  func.func @transform_3(%arg0: i32, %arg1: i32) -> (i32, i32, i32) {
    %c0_i32 = arith.constant 0 : i32
    %c0_i32_0 = arith.constant 0 : i32
    %c0_i32_1 = arith.constant 0 : i32
    return %arg0, %c0_i32, %c0_i32_0 : i32, i32, i32
  }
}

</mosaic_0001>

<llo_original>
// kernel: tpu_custom_call.1
$region0: #{tpu_custom_call.1}
  #allocation0 [shape = 'u32[]', space=smem, size = 0x4, offset = 0x4, fixed_abs, tag = 'smem constant byte address 0x4 - core index']
  #allocation1 [shape = 'u32[144,128]{1,0:T(1,128)}', space=vmem, size = 0x12000, scoped, tag = 'internal scratch']
  #allocation2 [shape = 'f32[16,1]{1,0:T(8,128)}', space=vmem, size = 0x2000, scoped, tag = 'scratch operand']
  #allocation3 [shape = 'f32[16,1]{1,0:T(8,128)}', space=vmem, size = 0x2000, scoped, tag = 'scratch operand']
  %s0 = inlined_call_operand.hbm [shape: f32[10,128], index: 0, kind: input, shape index: {}]
  %s1 = inlined_call_operand.hbm [shape: f32[10,128], index: 1, kind: input, shape index: {}]
  %s2 = inlined_call_operand.hbm [shape: f32[10,128], index: 2, kind: input, shape index: {}]
  %s3 = inlined_call_operand.hbm [shape: f32[1,8,128], index: 3, kind: output, shape index: {}]
  %s4 = sld [smem:[#allocation0]]
  $region42: #{tpu_custom_call.1} parent=0
    _
  %s6 = ssub.s32 1, %s4
  %s7 = scalar_select 0, %s6, %s4
  $region1: #{tpu_custom_call.1} parent=0
    #allocation4 [shape = 'u8[8192]{0}', space=vmem, size = 0x2000, scoped, tag = 'input window, operand 0, single buffered']
    #allocation5 [shape = 's32[1]{0}', space=sflag, size = 0x4, scoped, tag = 'scoped memory for tpu_custom_call.1']
    #allocation6 [shape = 's32[1]{0}', space=sflag, size = 0x4, scoped, tag = 'scoped memory for tpu_custom_call.1']
    #allocation7 [shape = 'u8[8192]{0}', space=vmem, size = 0x2000, scoped, tag = 'input window, operand 1, single buffered']
    #allocation8 [shape = 's32[1]{0}', space=sflag, size = 0x4, scoped, tag = 'scoped memory for tpu_custom_call.1']
    #allocation9 [shape = 'u8[8192]{0}', space=vmem, size = 0x2000, scoped, tag = 'input window, operand 2, single buffered']
    #allocation10 [shape = 'u8[4096]{0}', space=vmem, size = 0x1000, scoped, tag = 'output window, operand 0, single buffered']
    %8 = vsyncpa [#allocation5], 0
    %9 = vsyncpa [#allocation8], 0
    %10 = vsyncpa [#allocation6], 0
    // Predicated region
    $region2: #{tpu_custom_call.1} parent=1 // pred_check
      _
    $region3: #{tpu_custom_call.1} parent=1 // pred_check_branch
      %12 = sbr.rel (0) target = $region5
    $region4: #{tpu_custom_call.1} parent=1 // pred_region
      %s14 = ssub.s32 256, 256
      %15 = vsyncadd [#allocation5], %s14
      %s16 = sshll.u32 [#allocation4], 4
      %s17 = int_to_ptr.vmem [resolvable:$true] %s16
      %22 = dma.hbm_to_vmem [thread:$0]  %s0, 256, %s17, [#allocation5], 128, 128, 8
    $region5: #{tpu_custom_call.1} parent=1 // pred_fallthru
      _
    // Predicated region
    $region6: #{tpu_custom_call.1} parent=1 // pred_check
      _
    $region7: #{tpu_custom_call.1} parent=1 // pred_check_branch
      %24 = sbr.rel (0) target = $region9
    $region8: #{tpu_custom_call.1} parent=1 // pred_region
      %s26 = ssub.s32 256, 256
      %27 = vsyncadd [#allocation8], %s26
      %s28 = sshll.u32 [#allocation7], 4
      %s29 = int_to_ptr.vmem [resolvable:$true] %s28
      %34 = dma.hbm_to_vmem [thread:$0]  %s1, 256, %s29, [#allocation8], 128, 128, 8
    $region9: #{tpu_custom_call.1} parent=1 // pred_fallthru
      _
    // Predicated region
    $region10: #{tpu_custom_call.1} parent=1 // pred_check
      _
    $region11: #{tpu_custom_call.1} parent=1 // pred_check_branch
      %36 = sbr.rel (0) target = $region13
    $region12: #{tpu_custom_call.1} parent=1 // pred_region
      %s38 = ssub.s32 256, 256
      %39 = vsyncadd [#allocation8], %s38
      %s40 = sshll.u32 [#allocation9], 4
      %s41 = int_to_ptr.vmem [resolvable:$true] %s40
      %46 = dma.hbm_to_vmem [thread:$0]  %s2, 256, %s41, [#allocation8], 128, 128, 8
    $region13: #{tpu_custom_call.1} parent=1 // pred_fallthru
      _
    // Predicated region
    $region14: #{tpu_custom_call.1} parent=1 // pred_check
      _
    $region15: #{tpu_custom_call.1} parent=1 // pred_check_branch
      %48 = sbr.rel (0) target = $region17
    $region16: #{tpu_custom_call.1} parent=1 // pred_region
      %49 = dma.done [#allocation5], 256
    $region17: #{tpu_custom_call.1} parent=1 // pred_fallthru
      _
    // Predicated region
    $region18: #{tpu_custom_call.1} parent=1 // pred_check
      _
    $region19: #{tpu_custom_call.1} parent=1 // pred_check_branch
      %51 = sbr.rel (0) target = $region21
    $region20: #{tpu_custom_call.1} parent=1 // pred_region
      %52 = dma.done [#allocation8], 256
    $region21: #{tpu_custom_call.1} parent=1 // pred_fallthru
      _
    // Predicated region
    $region22: #{tpu_custom_call.1} parent=1 // pred_check
      _
    $region23: #{tpu_custom_call.1} parent=1 // pred_check_branch
      %54 = sbr.rel (0) target = $region25
    $region24: #{tpu_custom_call.1} parent=1 // pred_region
      %55 = dma.done [#allocation8], 256
    $region25: #{tpu_custom_call.1} parent=1 // pred_fallthru
      _
    %p56 = scmp.eq.s32.totalorder 0, 0
    // Predicated region
    $region26: #{tpu_custom_call.1} parent=1 // pred_check
      %p57 = pneg %p56
    $region27: #{tpu_custom_call.1} parent=1 // pred_check_branch
      %59 = sbr.rel (%p57) target = $region29
    $region28: #{tpu_custom_call.1} parent=1 // pred_region
      %vm60 = vcmask 7168
      %61 = vst.msk [vmem:[#allocation2] sm:$0xff] %vm60, 0.0
      %62 = vst.msk [vmem:[#allocation2 + $0x8] sm:$0xff] %vm60, 0.0
      %63 = vst.msk [vmem:[#allocation3] sm:$0xff] %vm60, 0.0
      %64 = vst.msk [vmem:[#allocation3 + $0x8] sm:$0xff] %vm60, 0.0
    $region29: #{tpu_custom_call.1} parent=1 // pred_fallthru
      _
    %v65 = vld [vmem:[#allocation4] sm:$0xff]
    %v66 = vld [vmem:[#allocation4 + $0x8] sm:$0xff]
    %v67 = vld [vmem:[#allocation7] sm:$0xff]
    %v68 = vld [vmem:[#allocation7 + $0x8] sm:$0xff]
    %v69 = vsub.f32 %v65, %v67
    %v70 = vsub.f32 %v66, %v68
    %v71 = vld [vmem:[#allocation9] sm:$0xff]
    %v72 = vld [vmem:[#allocation9 + $0x8] sm:$0xff]
    %v73 = vsub.f32 %v65, %v71
    %v74 = vsub.f32 %v66, %v72
    %v75 = vld [vmem:[#allocation2] sm:$0xff]
    %v76 = vld [vmem:[#allocation2 + $0x8] sm:$0xff]
    %v77 = vmul.f32 %v69, %v69
    %v78 = vmul.f32 %v70, %v70
    %79 = vadd.xlane.f32.xlu0 %v77
    %v80 = vpop.xlane.xlu0 %79
    %81 = vadd.xlane.f32.xlu0 %v78
    %v82 = vpop.xlane.xlu0 %81
    %v83 = vadd.f32 %v75, %v80
    %v84 = vadd.f32 %v76, %v82
    %vm85 = vcmask 7168
    %86 = vst.msk [vmem:[#allocation2] sm:$0xff] %vm85, %v83
    %87 = vst.msk [vmem:[#allocation2 + $0x8] sm:$0xff] %vm85, %v84
    %v88 = vld [vmem:[#allocation3] sm:$0xff]
    %v89 = vld [vmem:[#allocation3 + $0x8] sm:$0xff]
    %v90 = vmul.f32 %v73, %v73
    %v91 = vmul.f32 %v74, %v74
    %92 = vadd.xlane.f32.xlu0 %v90
    %v93 = vpop.xlane.xlu0 %92
    %94 = vadd.xlane.f32.xlu0 %v91
    %v95 = vpop.xlane.xlu0 %94
    %v96 = vadd.f32 %v88, %v93
    %v97 = vadd.f32 %v89, %v95
    %98 = vst.msk [vmem:[#allocation3] sm:$0xff] %vm85, %v96
    %99 = vst.msk [vmem:[#allocation3 + $0x8] sm:$0xff] %vm85, %v97
    // Predicated region
    $region30: #{tpu_custom_call.1} parent=1 // pred_check
      %p100 = pneg %p56
    $region31: #{tpu_custom_call.1} parent=1 // pred_check_branch
      %102 = sbr.rel (%p100) target = $region33
    $region32: #{tpu_custom_call.1} parent=1 // pred_region
      %v103 = vld [vmem:[#allocation2] sm:$0xff]
      %v104 = vld [vmem:[#allocation2 + $0x8] sm:$0xff]
      %v105 = vrsqrt.pop %v103
      %v106 = vmul.f32 %v103, %v105
      %vm107 = vcmp.eq.f32.partialorder %v103, inf
      %v108 = vsel %vm107, %v103, %v106
      %vm109 = vcmp.eq.f32.partialorder %v103, 0.0
      %v110 = vand.u32 %v103, 2147483648
      %v111 = vsel %vm109, %v110, %v108
      %v112 = vrsqrt.pop %v104
      %v113 = vmul.f32 %v104, %v112
      %vm114 = vcmp.eq.f32.partialorder %v104, inf
      %v115 = vsel %vm114, %v104, %v113
      %vm116 = vcmp.eq.f32.partialorder %v104, 0.0
      %v117 = vand.u32 %v104, 2147483648
      %v118 = vsel %vm116, %v117, %v115
      %v119 = vld [vmem:[#allocation3] sm:$0xff]
      %v120 = vld [vmem:[#allocation3 + $0x8] sm:$0xff]
      %v121 = vrsqrt.pop %v119
      %v122 = vmul.f32 %v119, %v121
      %vm123 = vcmp.eq.f32.partialorder %v119, inf
      %v124 = vsel %vm123, %v119, %v122
      %vm125 = vcmp.eq.f32.partialorder %v119, 0.0
      %v126 = vand.u32 %v119, 2147483648
      %v127 = vsel %vm125, %v126, %v124
      %v128 = vrsqrt.pop %v120
      %v129 = vmul.f32 %v120, %v128
      %vm130 = vcmp.eq.f32.partialorder %v120, inf
      %v131 = vsel %vm130, %v120, %v129
      %vm132 = vcmp.eq.f32.partialorder %v120, 0.0
      %v133 = vand.u32 %v120, 2147483648
      %v134 = vsel %vm132, %v133, %v131
      %v135 = vsub.f32 %v111, %v127
      %v136 = vsub.f32 %v118, %v134
      %v137 = vadd.f32 %v135, 1.0
      %v138 = vadd.f32 %v136, 1.0
      %v139 = vmax.f32 %v137, 0.0
      %v140 = vmax.f32 %v138, 0.0
      %s141 = smul.u32 0, 16
      %v142 = vlaneseq
      %v143 = vshrl.u32 %v142, 7
      %v144 = vadd.s32 %v143, 8
      %v145 = vstv %s141
      %v146 = vadd.s32 %v145, %v143
      %v147 = vadd.s32 %v145, %v144
      %vm148 = vcmp.lt.s32.totalorder %v146, 10
      %vm149 = vcmp.lt.s32.totalorder %v147, 10
      %v150 = vsel %vm148, %v139, 0.0
      %v151 = vsel %vm149, %v140, 0.0
      %v152 = vsel %vm85, %v150, 0.0
      %v153 = vsel %vm85, %v151, 0.0
      %v154 = vadd.f32 %v152, %v153
      %155 = vadd.xlane.f32.xlu0 %v154
      %v156 = vpop.xlane.xlu0 %155
      %v157 = vrot.slane %v156, 4
      %v158 = vadd.f32 %v156, %v157
      %v159 = vrot.slane %v158, 2
      %v160 = vadd.f32 %v158, %v159
      %v161 = vrot.slane %v160, 1
      %v162 = vadd.f32 %v160, %v161
      %s163 = vtos %v162
      %v164 = vstv %s163
      %165 = vst [vmem:[#allocation10] sm:$0xff] %v164
    $region33: #{tpu_custom_call.1} parent=1 // pred_fallthru
      _
    // Predicated region
    $region34: #{tpu_custom_call.1} parent=1 // pred_check
      _
    $region35: #{tpu_custom_call.1} parent=1 // pred_check_branch
      %167 = sbr.rel (0) target = $region37
    $region36: #{tpu_custom_call.1} parent=1 // pred_region
      %s169 = ssub.s32 128, 128
      %170 = vsyncadd [#allocation6], %s169
      %s172 = sshll.u32 [#allocation10], 4
      %s173 = int_to_ptr.vmem [resolvable:$true] %s172
      %175 = dma.vmem_to_hbm [thread:$0]  %s173, 128, %s3, [#allocation6]
    $region37: #{tpu_custom_call.1} parent=1 // pred_fallthru
      _
    // Predicated region
    $region38: #{tpu_custom_call.1} parent=1 // pred_check
      _
    $region39: #{tpu_custom_call.1} parent=1 // pred_check_branch
      %177 = sbr.rel (0) target = $region41
    $region40: #{tpu_custom_call.1} parent=1 // pred_region
      %178 = dma.done [#allocation6], 128
    $region41: #{tpu_custom_call.1} parent=1 // pred_fallthru
      _
    %179 = vsyncpa [#allocation5], 1
    %180 = vsyncpa [#allocation8], 1
    %181 = vsyncpa [#allocation6], 1

</llo_original>
